<compile_context>
chip_gen: v6e
topology: v6e:2x2x1
jax: 0.10.0
libtpu: 0.0.40
codegen_flags: <defaults>
</compile_context>

<pallas_src>
import functools

import jax
import jax.numpy as jnp
from jax.experimental import pallas as pl
from jax.experimental.pallas import tpu as pltpu


_VMEM_BUDGET_BYTES = 20 * 1024 * 1024   # conservative vs. 32 MiB scoped default
_MIN_WORK_FOR_PALLAS = 1 << 16          # below this, XLA fusion wins on overhead


def _round_up(x: int, m: int) -> int:
    return ((x + m - 1) // m) * m


def _stable_sigmoid(z):
    # sigmoid(z) = 0.5 * tanh(0.5 * z) + 0.5 : one EUP tanh, no inf intermediate.
    return 0.5 * jnp.tanh(0.5 * z) + 0.5


def _perceptron_kernel(x_ref, w_ref, b_ref, o_ref, *, compute_dtype):
    # x_ref: [tm, IN]   batch tile, full feature dim (K never tiled)
    # w_ref: [IN, tn]   pre-transposed weight tile (VMEM-resident when tn == OUT)
    # b_ref: [1,  tn]   bias tile
    # o_ref: [tm, tn]   output tile
    x = x_ref[...]
    w = w_ref[...]
    if compute_dtype is not None:
        # bf16 MXU path: cast in-kernel (VPU) so HBM traffic stays at the
        # original dtype; accumulate in f32.
        x = x.astype(compute_dtype)
        w = w.astype(compute_dtype)
    z = jnp.dot(x, w, preferred_element_type=jnp.float32)
    z = z + b_ref[...].astype(jnp.float32)          # bias folded, broadcast over rows
    o_ref[...] = _stable_sigmoid(z).astype(o_ref.dtype)


def _choose_tiles(B, IN, OUT, x_bpe, w_bpe, o_bpe, tm_cap):
    """Pick (tm, tn). Prefer full-OUT tiles (resident W); budget-limited tm."""
    Bp8 = _round_up(max(B, 1), 8)
    tn_candidates = [OUT] + [t for t in (512, 256, 128) if t < OUT]
    for tn in tn_candidates:
        fixed = 2 * IN * tn * w_bpe + 2 * tn * 4          # W + bias (double-buffered)
        per_row = 2 * IN * x_bpe + 2 * tn * o_bpe         # x + out rows (double-buffered)
        avail = _VMEM_BUDGET_BYTES - fixed
        if avail <= 0:
            continue
        tm = min(tm_cap, Bp8, (avail // per_row // 8) * 8)
        if Bp8 > 256:
            # Keep >= 2 batch tiles so both v7x TensorCores get work.
            tm = min(tm, _round_up(-(-B // 2), 8))
        if tm >= 8:
            return int(tm), int(tn)
    return None


def prepare_params(weight, bias, param_dtype=None):
    """Hoisted out of the per-call path: transpose W once to [IN, OUT] and
    shape the bias as a row vector. Call once per parameter update."""
    w_t = jnp.asarray(weight).T            # [IN, OUT]
    b_row = jnp.asarray(bias).reshape(1, -1)
    if param_dtype is not None:
        w_t = w_t.astype(param_dtype)
    return w_t, b_row


def perceptron_forward(x, w_t, bias_row, *, compute_dtype=None, tm_cap=512,
                       use_pallas=None):
    """y = sigmoid(x @ w_t + bias_row), fused matmul + bias + sigmoid.

    x:        [B, IN]
    w_t:      [IN, OUT]  (pre-transposed via prepare_params)
    bias_row: [1, OUT]
    """
    B, IN = x.shape
    IN2, OUT = w_t.shape
    assert IN == IN2, (IN, IN2)
    assert bias_row.shape == (1, OUT), bias_row.shape

    out_dtype = x.dtype

    if use_pallas is None:
        use_pallas = (B * IN * OUT) >= _MIN_WORK_FOR_PALLAS

    tiles = _choose_tiles(
        B, IN, OUT,
        x_bpe=jnp.dtype(x.dtype).itemsize,
        w_bpe=jnp.dtype(w_t.dtype).itemsize,
        o_bpe=jnp.dtype(out_dtype).itemsize,
        tm_cap=tm_cap,
    )

    if (not use_pallas) or tiles is None:
        # Tiny shapes (pallas_call overhead dominates) or feature dims too
        # large for VMEM-resident full-K blocks.
        # TODO(synk): add a K-tiled accumulator Pallas path for IN too large
        # to keep the full contraction dim resident in VMEM.
        z = jnp.dot(x, w_t, preferred_element_type=jnp.float32) + bias_row
        return _stable_sigmoid(z).astype(out_dtype)

    tm, tn = tiles
    grid = (pl.cdiv(B, tm), pl.cdiv(OUT, tn))   # usually (num_batch_tiles, 1)

    kernel = functools.partial(_perceptron_kernel, compute_dtype=compute_dtype)

    return pl.pallas_call(
        kernel,
        out_shape=jax.ShapeDtypeStruct((B, OUT), out_dtype),
        grid_spec=pltpu.PrefetchScalarGridSpec(
            num_scalar_prefetch=0,
            grid=grid,
            in_specs=[
                # x: full feature dim per block, each batch tile read exactly once.
                pl.BlockSpec((tm, IN), lambda i, j: (i, 0)),
                # W^T: constant block index when tn == OUT -> DMA'd once, resident.
                pl.BlockSpec((IN, tn), lambda i, j: (0, j)),
                # bias
                pl.BlockSpec((1, tn), lambda i, j: (0, j)),
            ],
            out_specs=pl.BlockSpec((tm, tn), lambda i, j: (i, j)),
        ),
        compiler_params=pltpu.CompilerParams(
            # Both grid axes write disjoint output tiles -> megacore-shardable.
            dimension_semantics=("parallel", "parallel"),
        ),
    )(x, w_t, bias_row)


def reference_forward(x, weight, bias):
    return jax.nn.sigmoid(x @ weight.T + bias)


if __name__ == "__main__":
    key = jax.random.PRNGKey(0)

    def make_case(case_key, B, IN, OUT):
        kx, kw, kb = jax.random.split(case_key, 3)
        bound = 1.0 / (IN ** 0.5)   # PyTorch nn.Linear-style uniform init
        weight = jax.random.uniform(kw, (OUT, IN), jnp.float32, -bound, bound)
        bias = jax.random.uniform(kb, (OUT,), jnp.float32, -bound, bound)
        x = jax.random.normal(kx, (B, IN), jnp.float32)
        return x, weight, bias

    k1, k2, k3 = jax.random.split(key, 3)

    # Case 1: the module's small shape (Perceptron(32, 16)).
    # Force the Pallas path so the kernel itself is exercised (by default this
    # size takes the XLA fast path).
    x, w, b = make_case(k1, B=8, IN=32, OUT=16)
    w_t, b_row = prepare_params(w, b)
    y = jax.block_until_ready(perceptron_forward(x, w_t, b_row, use_pallas=True))
    y_ref = reference_forward(x, w, b)
    assert y.shape == (8, 16)
    assert jnp.allclose(y, y_ref, atol=2e-3, rtol=2e-3), float(
        jnp.max(jnp.abs(y - y_ref)))

    # Case 2: ragged, multi-batch-tile shape; no padding/slicing copies anywhere,
    # full-OUT resident weight, two "parallel" batch tiles.
    x, w, b = make_case(k2, B=300, IN=384, OUT=272)
    w_t, b_row = prepare_params(w, b)
    y = jax.block_until_ready(perceptron_forward(x, w_t, b_row))
    y_ref = reference_forward(x, w, b)
    assert y.shape == (300, 272)
    assert jnp.allclose(y, y_ref, atol=2e-3, rtol=2e-3), float(
        jnp.max(jnp.abs(y - y_ref)))

    # Case 3: bf16 compute path (bf16-native MXU on v6e/v7x), f32 accumulation.
    x, w, b = make_case(k3, B=1024, IN=256, OUT=128)
    w_t, b_row = prepare_params(w, b)
    y = jax.block_until_ready(
        perceptron_forward(x, w_t, b_row, compute_dtype=jnp.bfloat16))
    y_ref = reference_forward(x, w, b)
    assert y.shape == (1024, 128)
    assert jnp.allclose(y, y_ref, atol=2e-2, rtol=2e-2), float(
        jnp.max(jnp.abs(y - y_ref)))

    print("KERNEL_OK")
</pallas_src>

<mosaic_0001>
module attributes {stable_mosaic.version = 11 : i64} {
  func.func @_perceptron_kernel(%arg0: i32, %arg1: i32, %arg2: memref<8x32xf32, #tpu.memory_space<vmem>>, %arg3: memref<32x16xf32, #tpu.memory_space<vmem>>, %arg4: memref<1x16xf32, #tpu.memory_space<vmem>>, %arg5: memref<8x16xf32, #tpu.memory_space<vmem>>) attributes {dimension_semantics = [#tpu.dimension_semantics<parallel>, #tpu.dimension_semantics<parallel>], iteration_bounds = array<i64: 1, 1>, scalar_prefetch = 0 : i64, scratch_operands = 0 : i64, tpu.core_type = #tpu.core_type<tc>, window_params = [{transform_indices = @transform_0, window_bounds = array<i64: 8, 32>}, {transform_indices = @transform_1, window_bounds = array<i64: 32, 16>}, {transform_indices = @transform_2, window_bounds = array<i64: 1, 16>}, {transform_indices = @transform_3, window_bounds = array<i64: 8, 16>}]} {
    %c0 = arith.constant 0 : index
    %c0_0 = arith.constant 0 : index
    %0 = vector.load %arg2[%c0, %c0_0] : memref<8x32xf32, #tpu.memory_space<vmem>>, vector<8x32xf32>
    %c0_1 = arith.constant 0 : index
    %c0_2 = arith.constant 0 : index
    %1 = vector.load %arg3[%c0_1, %c0_2] : memref<32x16xf32, #tpu.memory_space<vmem>>, vector<32x16xf32>
    %cst = arith.constant dense<0.000000e+00> : vector<8x16xf32>
    %2 = tpu.matmul %0, %1, %cst {dimension_numbers = #tpu.dot_dimension_numbers<[1], [0], [0], [1], [0, 0, 1, 1], [], []>} : vector<8x32xf32>, vector<32x16xf32>, vector<8x16xf32> -> vector<8x16xf32>
    %c0_3 = arith.constant 0 : index
    %c0_4 = arith.constant 0 : index
    %3 = vector.load %arg4[%c0_3, %c0_4] : memref<1x16xf32, #tpu.memory_space<vmem>>, vector<1x16xf32>
    %4 = vector.broadcast %3 : vector<1x16xf32> to vector<8x16xf32>
    %5 = arith.addf %2, %4 : vector<8x16xf32>
    %cst_5 = arith.constant 5.000000e-01 : f32
    %6 = vector.broadcast %cst_5 : f32 to vector<8x16xf32>
    %7 = arith.mulf %6, %5 : vector<8x16xf32>
    %8 = math.tanh %7 : vector<8x16xf32>
    %cst_6 = arith.constant 5.000000e-01 : f32
    %9 = vector.broadcast %cst_6 : f32 to vector<8x16xf32>
    %10 = arith.mulf %9, %8 : vector<8x16xf32>
    %cst_7 = arith.constant 5.000000e-01 : f32
    %11 = vector.broadcast %cst_7 : f32 to vector<8x16xf32>
    %12 = arith.addf %10, %11 : vector<8x16xf32>
    %c0_8 = arith.constant 0 : index
    %c0_9 = arith.constant 0 : index
    %13 = vector.load %arg5[%c0_8, %c0_9] : memref<8x16xf32, #tpu.memory_space<vmem>>, vector<8x16xf32>
    tpu.vector_store %arg5[%c0_8, %c0_9], %12 {strides = array<i32>} : memref<8x16xf32, #tpu.memory_space<vmem>>, vector<8x16xf32>,
    return
  }
  func.func @transform_0(%arg0: i32, %arg1: i32) -> (i32, i32) {
    %c0_i32 = arith.constant 0 : i32
    %c0_i32_0 = arith.constant 0 : i32
    return %arg0, %c0_i32 : i32, i32
  }
  func.func @transform_1(%arg0: i32, %arg1: i32) -> (i32, i32) {
    %c0_i32 = arith.constant 0 : i32
    %c0_i32_0 = arith.constant 0 : i32
    return %c0_i32, %arg1 : i32, i32
  }
  func.func @transform_2(%arg0: i32, %arg1: i32) -> (i32, i32) {
    %c0_i32 = arith.constant 0 : i32
    %c0_i32_0 = arith.constant 0 : i32
    return %c0_i32, %arg1 : i32, i32
  }
  func.func @transform_3(%arg0: i32, %arg1: i32) -> (i32, i32) {
    %c0_i32 = arith.constant 0 : i32
    return %arg0, %arg1 : i32, i32
  }
}

</mosaic_0001>

<llo_original>
// kernel: tpu_custom_call.1
$region0: #{tpu_custom_call.1}
  #allocation0 [shape = 'u32[]', space=smem, size = 0x4, offset = 0x4, fixed_abs, tag = 'smem constant byte address 0x4 - core index']
  #allocation1 [shape = 'u32[144,128]{1,0:T(1,128)}', space=vmem, size = 0x12000, scoped, tag = 'internal scratch']
  %s0 = inlined_call_operand.vmem [shape: f32[8,32], index: 0, kind: input, shape index: {}]
  %s1 = inlined_call_operand.vmem [shape: f32[32,16], index: 1, kind: input, shape index: {}]
  %s2 = inlined_call_operand.vmem [shape: f32[1,16], index: 2, kind: input, shape index: {}]
  %s3 = inlined_call_operand.hbm [shape: f32[8,16], index: 3, kind: output, shape index: {}]
  %s4 = sld [smem:[#allocation0]]
  $region22: #{tpu_custom_call.1} parent=0
    _
  %s6 = ssub.s32 1, %s4
  %s7 = scalar_select 0, %s6, %s4
  $region1: #{tpu_custom_call.1} parent=0
    #allocation2 [shape = 'u8[4096]{0}', space=vmem, size = 0x1000, scoped, tag = 'output window, operand 0, single buffered']
    #allocation3 [shape = 's32[1]{0}', space=sflag, size = 0x4, scoped, tag = 'scoped memory for tpu_custom_call.1']
    %8 = vsyncpa [#allocation3], 0
    // Predicated region
    $region2: #{tpu_custom_call.1} parent=1 // pred_check
      _
    $region3: #{tpu_custom_call.1} parent=1 // pred_check_branch
      %10 = sbr.rel (0) target = $region5
    $region4: #{tpu_custom_call.1} parent=1 // pred_region
      _
    $region5: #{tpu_custom_call.1} parent=1 // pred_fallthru
      _
    // Predicated region
    $region6: #{tpu_custom_call.1} parent=1 // pred_check
      _
    $region7: #{tpu_custom_call.1} parent=1 // pred_check_branch
      %12 = sbr.rel (0) target = $region9
    $region8: #{tpu_custom_call.1} parent=1 // pred_region
      _
    $region9: #{tpu_custom_call.1} parent=1 // pred_fallthru
      _
    // Predicated region
    $region10: #{tpu_custom_call.1} parent=1 // pred_check
      _
    $region11: #{tpu_custom_call.1} parent=1 // pred_check_branch
      %14 = sbr.rel (0) target = $region13
    $region12: #{tpu_custom_call.1} parent=1 // pred_region
      _
    $region13: #{tpu_custom_call.1} parent=1 // pred_fallthru
      _
    %v15 = vld [vmem:[%s0] sm:$0xff]
    %v16 = vld [vmem:[%s1] sm:$0xff]
    %v17 = vld [vmem:[%s1 + $0x8] sm:$0xff]
    %v18 = vld [vmem:[%s1 + $0x10] sm:$0xff]
    %v19 = vld [vmem:[%s1 + $0x18] sm:$0xff]
    %v20 = vld [vmem:[%s2] sm:$0x1]
    %v22 = vlaneseq
    %v23 = vshrl.u32 %v22, 7
    %v24 = vsub.s32 0, %v23
    %v25 = vrot.slane %v20, %v24
    %vm27 = vcmask 261120
    %v29 = vsel %vm27, %v15, 0
    %31 = vmatprep.subr.mxu0 0.0
    %32 = vmatpush1.msra.mxu0 0.0
    %33 = vmatprep.subr.mxu0 0.0
    %34 = vmatpush1.msra.mxu0 0.0
    %35 = vmatprep.subr.mxu0 0.0
    %36 = vmatpush1.msra.mxu0 0.0
    %37 = vmatprep.subr.mxu0 0.0
    %38 = vmatpush1.msra.mxu0 0.0
    %39 = vmatprep.subr.mxu0 0.0
    %40 = vmatpush1.msra.mxu0 0.0
    %41 = vmatprep.subr.mxu0 0.0
    %42 = vmatpush1.msra.mxu0 0.0
    %43 = vmatprep.subr.mxu0 0.0
    %44 = vmatpush1.msra.mxu0 0.0
    %45 = vmatprep.subr.mxu0 0.0
    %46 = vmatpush1.msra.mxu0 0.0
    %47 = vmatprep.subr.mxu0 0.0
    %48 = vmatpush1.msra.mxu0 0.0
    %49 = vmatprep.subr.mxu0 0.0
    %50 = vmatpush1.msra.mxu0 0.0
    %51 = vmatprep.subr.mxu0 0.0
    %52 = vmatpush1.msra.mxu0 0.0
    %53 = vmatprep.subr.mxu0 0.0
    %54 = vmatpush1.msra.mxu0 0.0
    %55 = vmatprep.subr.mxu0 0.0
    %56 = vmatpush1.msra.mxu0 %v19
    %57 = vmatprep.subr.mxu0 0.0
    %58 = vmatpush1.msra.mxu0 %v18
    %59 = vmatprep.subr.mxu0 0.0
    %60 = vmatpush1.msra.mxu0 %v17
    %61 = vmatprep.subr.mxu0 0.0
    %62 = vmatpush1.msra.mxu0 %v16
    %63 = vmatprep.subr.mxu0 0.0
    %64 = vmatpush2.msra.mxu0 0.0
    %65 = vmatprep.subr.mxu0 0.0
    %66 = vmatpush2.msra.mxu0 0.0
    %67 = vmatprep.subr.mxu0 0.0
    %68 = vmatpush2.msra.mxu0 0.0
    %69 = vmatprep.subr.mxu0 0.0
    %70 = vmatpush2.msra.mxu0 0.0
    %71 = vmatprep.subr.mxu0 0.0
    %72 = vmatpush2.msra.mxu0 0.0
    %73 = vmatprep.subr.mxu0 0.0
    %74 = vmatpush2.msra.mxu0 0.0
    %75 = vmatprep.subr.mxu0 0.0
    %76 = vmatpush2.msra.mxu0 0.0
    %77 = vmatprep.subr.mxu0 0.0
    %78 = vmatpush2.msra.mxu0 0.0
    %79 = vmatprep.subr.mxu0 0.0
    %80 = vmatpush2.msra.mxu0 0.0
    %81 = vmatprep.subr.mxu0 0.0
    %82 = vmatpush2.msra.mxu0 0.0
    %83 = vmatprep.subr.mxu0 0.0
    %84 = vmatpush2.msra.mxu0 0.0
    %85 = vmatprep.subr.mxu0 0.0
    %86 = vmatpush2.msra.mxu0 0.0
    %87 = vmatprep.subr.mxu0 0.0
    %88 = vmatpush2.msra.mxu0 0.0
    %89 = vmatprep.subr.mxu0 0.0
    %90 = vmatpush2.msra.mxu0 0.0
    %91 = vmatprep.subr.mxu0 0.0
    %92 = vmatpush2.msra.mxu0 0.0
    %93 = vmatprep.subr.mxu0 0.0
    %94 = vmatpush2.msra.mxu0 0.0
    %95 = vmatprep.mubr.f32.mxu0 0.0
    %96 = vmatmul.mubr.f32.gmra.mxu0 %v29
    %v97 = vpop.f32.mrf.mxu0
    %v98 = vadd.f32 %v25, %v97
    %v99 = vpop.f32.mrf.mxu0
    %100 = vdwg.mxu0
    %v101 = vmul.f32 %v98, 0.5
    %v102 = vtanh.pop %v101
    %v103 = vmul.f32 %v102, 0.5
    %v104 = vadd.f32 %v103, 0.5
    %vm105 = vcmask 130048
    %106 = vst.msk [vmem:[#allocation2] sm:$0xff] %vm105, %v104
    // Predicated region
    $region14: #{tpu_custom_call.1} parent=1 // pred_check
      _
    $region15: #{tpu_custom_call.1} parent=1 // pred_check_branch
      %108 = sbr.rel (0) target = $region17
    $region16: #{tpu_custom_call.1} parent=1 // pred_region
      %s110 = ssub.s32 128, 128
      %111 = vsyncadd [#allocation3], %s110
      %s113 = sshll.u32 [#allocation2], 4
      %s114 = int_to_ptr.vmem [resolvable:$true] %s113
      %116 = dma.vmem_to_hbm [thread:$0]  %s114, 128, %s3, [#allocation3]
    $region17: #{tpu_custom_call.1} parent=1 // pred_fallthru
      _
    // Predicated region
    $region18: #{tpu_custom_call.1} parent=1 // pred_check
      _
    $region19: #{tpu_custom_call.1} parent=1 // pred_check_branch
      %118 = sbr.rel (0) target = $region21
    $region20: #{tpu_custom_call.1} parent=1 // pred_region
      %119 = dma.done [#allocation3], 128
    $region21: #{tpu_custom_call.1} parent=1 // pred_fallthru
      _
    %120 = vsyncpa [#allocation3], 1

</llo_original>
